<compile_context>
chip_gen: v5e
topology: v5e:2x2
jax: 0.10.0
libtpu: 0.0.40
codegen_flags: <defaults>
</compile_context>

<pallas_src>
import math

import jax
import jax.numpy as jnp
from jax.experimental import pallas as pl
from jax.experimental.pallas import tpu as pltpu

_LANE = 128
_SUBLANE = 8


def _round_up(x, m):
    return (x + m - 1) // m * m


def _make_kernel(*, has_mask, has_bias, multi_k, x_resident, tk):
    """Kernel factory; refs are (x, w, [mask], [bias], out, [acc])."""

    def kernel(*refs):
        it = iter(refs)
        x_ref = next(it)
        w_ref = next(it)
        m_ref = next(it) if has_mask else None
        b_ref = next(it) if has_bias else None
        o_ref = next(it)
        acc_ref = next(it) if multi_k else None

        if multi_k and x_resident:
            k = pl.program_id(2)
            start = pl.multiple_of(k * tk, _LANE)
            xk = x_ref[:, pl.ds(start, tk)]
        else:
            xk = x_ref[...]

        w = w_ref[...]
        if has_mask:
            # {0,1} mask streamed as int8 and applied with a select: exact for
            # binary masks, no f32/bf16 mask stream, no upconvert on v5e.
            w = jnp.where(m_ref[...] != 0, w, jnp.zeros_like(w))

        part = jnp.dot(xk, w, preferred_element_type=jnp.float32)

        if multi_k:
            k = pl.program_id(2)

            @pl.when(k == 0)
            def _():
                acc_ref[...] = jnp.zeros_like(acc_ref)

            acc_ref[...] += part

            @pl.when(k == pl.num_programs(2) - 1)
            def _():
                res = acc_ref[...]
                if has_bias:
                    res = res + b_ref[...]
                o_ref[...] = res.astype(o_ref.dtype)
        else:
            # Single-K fast path: no accumulator scratch, write directly.
            if has_bias:
                part = part + b_ref[...]
            o_ref[...] = part.astype(o_ref.dtype)

    return kernel


def _mask_linear_padded(xp, wp, mp, bp, out_dtype, *, tb, tn, tk):
    """pallas_call on already padded/tiled operands.

    xp: (Bp, Inp)  wp: (Inp, Outp)  mp: (Inp, Outp) int8 or None
    bp: (1, Outp) f32 or None       -> (Bp, Outp) out_dtype
    """
    Bp, Inp = xp.shape
    Inp2, Outp = wp.shape
    assert Inp == Inp2
    has_mask = mp is not None
    has_bias = bp is not None
    grid_k = Inp // tk
    multi_k = grid_k > 1
    # Keep x resident across the (Out, K) grid axes when it is small.
    x_resident = (tb * Inp * xp.dtype.itemsize) <= (4 << 20)

    kernel = _make_kernel(has_mask=has_mask, has_bias=has_bias,
                          multi_k=multi_k, x_resident=x_resident, tk=tk)

    if multi_k:
        if x_resident:
            x_spec = pl.BlockSpec((tb, Inp), lambda i, j, k: (i, 0))
        else:
            x_spec = pl.BlockSpec((tb, tk), lambda i, j, k: (i, k))
        w_spec = pl.BlockSpec((tk, tn), lambda i, j, k: (k, j))
        m_spec = pl.BlockSpec((tk, tn), lambda i, j, k: (k, j))
        b_spec = pl.BlockSpec((1, tn), lambda i, j, k: (0, j))
        o_spec = pl.BlockSpec((tb, tn), lambda i, j, k: (i, j))
        grid = (Bp // tb, Outp // tn, grid_k)
        semantics = ("parallel", "parallel", "arbitrary")
        scratch = [pltpu.VMEM((tb, tn), jnp.float32)]
    else:
        x_spec = pl.BlockSpec((tb, Inp), lambda i, j: (i, 0))
        w_spec = pl.BlockSpec((Inp, tn), lambda i, j: (0, j))
        m_spec = pl.BlockSpec((Inp, tn), lambda i, j: (0, j))
        b_spec = pl.BlockSpec((1, tn), lambda i, j: (0, j))
        o_spec = pl.BlockSpec((tb, tn), lambda i, j: (i, j))
        grid = (Bp // tb, Outp // tn)
        semantics = ("parallel", "parallel")
        scratch = []

    in_specs = [x_spec, w_spec]
    operands = [xp, wp]
    if has_mask:
        in_specs.append(m_spec)
        operands.append(mp)
    if has_bias:
        in_specs.append(b_spec)
        operands.append(bp)

    bytes_accessed = int(sum(a.size * a.dtype.itemsize for a in operands)
                         + Bp * Outp * jnp.dtype(out_dtype).itemsize)

    return pl.pallas_call(
        kernel,
        out_shape=jax.ShapeDtypeStruct((Bp, Outp), out_dtype),
        grid=grid,
        in_specs=in_specs,
        out_specs=o_spec,
        scratch_shapes=scratch,
        compiler_params=pltpu.CompilerParams(dimension_semantics=semantics),
        cost_estimate=pl.CostEstimate(
            flops=2 * Bp * Inp * Outp,
            transcendentals=0,
            bytes_accessed=bytes_accessed,
        ),
    )(*operands)


def prepare_mask_linear(weight, mask=None, bias=None, *, fuse_mask=True,
                        compute_dtype=None, tn_max=512, tk_max=512):
    """One-time parameter prep (pad / cast / fuse) hoisted out of the hot path.

    fuse_mask=True (SafeDrug: mask = ddi_mask_H.t() is a constant {0,1}
    matrix) multiplies the mask into the weight once, so the kernel streams a
    single operand.  compute_dtype (e.g. jnp.bfloat16) is an explicit opt-in
    that rounds the weight (and, in apply, the activation); accumulation stays
    f32 inside the kernel.
    """
    In, Out = weight.shape
    if mask is not None:
        assert mask.shape == weight.shape
    if bias is not None:
        assert bias.shape == (Out,)

    tn = min(tn_max, _round_up(Out, _LANE))
    tk = min(tk_max, _round_up(In, _LANE))
    # v7x has two TensorCores; SafeDrug's batch is ~1 so the batch axis gives
    # no parallelism -- make sure the Out axis has >= 2 parallel blocks.
    if _round_up(Out, _LANE) <= tn and tn > _LANE:
        tn = _round_up((tn + 1) // 2, _LANE)
    Inp = _round_up(In, tk)
    Outp = _round_up(Out, tn)

    w = weight
    m = mask
    if fuse_mask and m is not None:
        w = w * m.astype(w.dtype)
        m = None
    if compute_dtype is not None:
        w = w.astype(compute_dtype)
    if (Inp, Outp) != (In, Out):
        w = jnp.pad(w, ((0, Inp - In), (0, Outp - Out)))
        if m is not None:
            m = jnp.pad(m, ((0, Inp - In), (0, Outp - Out)))
    if m is not None:
        m = m.astype(jnp.int8)  # {0,1}: 1 byte/elem HBM stream
    b = None
    if bias is not None:
        b = jnp.pad(bias.astype(jnp.float32), (0, Outp - Out)).reshape(1, Outp)

    return dict(weight=w, mask=m, bias=b, in_features=In, out_features=Out,
                tn=tn, tk=tk, compute_dtype=compute_dtype)


def apply_mask_linear(x, params, *, tb_max=128):
    """x: (B, In) -> (B, Out) using prepared (padded/fused) parameters."""
    In = params["in_features"]
    Out = params["out_features"]
    wp, mp, bp = params["weight"], params["mask"], params["bias"]
    tn, tk = params["tn"], params["tk"]

    B, In_x = x.shape
    assert In_x == In
    out_dtype = x.dtype
    cd = params["compute_dtype"]
    if cd is not None:
        x = x.astype(cd)

    Inp, Outp = wp.shape
    tb = min(tb_max, _round_up(B, _SUBLANE))
    Bp = _round_up(B, tb)
    xp = x if (Bp, Inp) == (B, In) else jnp.pad(x, ((0, Bp - B), (0, Inp - In)))

    out = _mask_linear_padded(xp, wp, mp, bp, out_dtype, tb=tb, tn=tn, tk=tk)
    return out[:B, :Out]


def mask_linear(x, weight, mask=None, bias=None, *, compute_dtype=None,
                fuse_mask=False, tb_max=128, tn_max=512, tk_max=512):
    """Generic MaskLinear.forward: mask is a per-call argument.

    The mask is streamed into the kernel as int8 and applied with a select
    (set fuse_mask=True / use prepare+apply when the mask is constant).
    """
    params = prepare_mask_linear(weight, mask, bias, fuse_mask=fuse_mask,
                                 compute_dtype=compute_dtype,
                                 tn_max=tn_max, tk_max=tk_max)
    return apply_mask_linear(x, params, tb_max=tb_max)


if __name__ == "__main__":
    key = jax.random.PRNGKey(0)

    # SafeDrug-like small shapes: bipartite_output = MaskLinear(
    #   in_features=ddi_mask_H.shape[1], out_features=voc_size[2], bias=False)
    batch, in_features, out_features = 8, 160, 131
    k_x, k_w, k_b, k_m = jax.random.split(key, 4)

    # Deterministic init mirroring reset_parameters():
    # uniform(-stdv, stdv) with stdv = 1/sqrt(out_features).
    stdv = 1.0 / math.sqrt(out_features)
    weight = jax.random.uniform(
        k_w, (in_features, out_features), jnp.float32, -stdv, stdv)
    bias = jax.random.uniform(k_b, (out_features,), jnp.float32, -stdv, stdv)
    x = jax.random.uniform(k_x, (batch, in_features), jnp.float32)
    mask = (jax.random.uniform(k_m, (in_features, out_features)) > 0.5
            ).astype(jnp.float32)

    ref = x @ (weight * mask)

    # 1) Production SafeDrug path: constant mask pre-fused once at init,
    #    bias=False, single-K fast path (no accumulator scratch).
    params = prepare_mask_linear(weight, mask, bias=None, fuse_mask=True)
    out_fused = apply_mask_linear(x, params)

    # 2) Generic MaskLinear path: runtime mask streamed as int8 + in-kernel
    #    select; bias enabled.
    out_dyn = mask_linear(x, weight, mask, bias=bias)

    # 3) Explicit bf16 opt-in (v6e/v7x MXU fast path, f32 accumulation).
    params_bf16 = prepare_mask_linear(weight, mask, bias=None, fuse_mask=True,
                                      compute_dtype=jnp.bfloat16)
    out_bf16 = apply_mask_linear(x, params_bf16)

    # 4) Multi-K path (In larger than one K tile): f32 VMEM accumulator.
    in_big = 1024
    k_x2, k_w2, k_m2 = jax.random.split(jax.random.PRNGKey(1), 3)
    w_big = jax.random.uniform(
        k_w2, (in_big, out_features), jnp.float32, -stdv, stdv)
    x_big = jax.random.uniform(k_x2, (batch, in_big), jnp.float32)
    m_big = (jax.random.uniform(k_m2, (in_big, out_features)) > 0.5
             ).astype(jnp.float32)
    out_big = mask_linear(x_big, w_big, m_big, bias=None)
    ref_big = x_big @ (w_big * m_big)

    out_fused, out_dyn, out_bf16, out_big = jax.block_until_ready(
        (out_fused, out_dyn, out_bf16, out_big))

    assert out_fused.shape == (batch, out_features)
    assert out_dyn.shape == (batch, out_features)
    assert out_big.shape == (batch, out_features)
    assert jnp.allclose(out_fused, ref, atol=1e-5, rtol=1e-5)
    assert jnp.allclose(out_dyn, ref + bias, atol=1e-5, rtol=1e-5)
    assert jnp.allclose(out_bf16, ref, atol=2e-2, rtol=2e-2)
    assert jnp.allclose(out_big, ref_big, atol=1e-4, rtol=1e-4)

    print("KERNEL_OK")
</pallas_src>

<mosaic_0001>
module attributes {stable_mosaic.version = 11 : i64} {
  func.func @kernel(%arg0: i32, %arg1: i32, %arg2: memref<8x256xf32, #tpu.memory_space<vmem>>, %arg3: memref<256x128xf32, #tpu.memory_space<vmem>>, %arg4: memref<8x128xf32, #tpu.memory_space<vmem>>) attributes {dimension_semantics = [#tpu.dimension_semantics<parallel>, #tpu.dimension_semantics<parallel>], iteration_bounds = array<i64: 1, 2>, scalar_prefetch = 0 : i64, scratch_operands = 0 : i64, tpu.core_type = #tpu.core_type<tc>, window_params = [{transform_indices = @transform_0, window_bounds = array<i64: 8, 256>}, {transform_indices = @transform_1, window_bounds = array<i64: 256, 128>}, {transform_indices = @transform_2, window_bounds = array<i64: 8, 128>}]} {
    %c0 = arith.constant 0 : index
    %c0_0 = arith.constant 0 : index
    %0 = vector.load %arg2[%c0, %c0_0] : memref<8x256xf32, #tpu.memory_space<vmem>>, vector<8x256xf32>
    %c0_1 = arith.constant 0 : index
    %c0_2 = arith.constant 0 : index
    %1 = vector.load %arg3[%c0_1, %c0_2] : memref<256x128xf32, #tpu.memory_space<vmem>>, vector<256x128xf32>
    %cst = arith.constant dense<0.000000e+00> : vector<8x128xf32>
    %2 = tpu.matmul %0, %1, %cst {dimension_numbers = #tpu.dot_dimension_numbers<[1], [0], [0], [1], [0, 0, 1, 1], [], []>} : vector<8x256xf32>, vector<256x128xf32>, vector<8x128xf32> -> vector<8x128xf32>
    %c0_3 = arith.constant 0 : index
    %c0_4 = arith.constant 0 : index
    %3 = vector.load %arg4[%c0_3, %c0_4] : memref<8x128xf32, #tpu.memory_space<vmem>>, vector<8x128xf32>
    tpu.vector_store %arg4[%c0_3, %c0_4], %2 {strides = array<i32>} : memref<8x128xf32, #tpu.memory_space<vmem>>, vector<8x128xf32>,
    return
  }
  func.func @transform_0(%arg0: i32, %arg1: i32) -> (i32, i32) {
    %c0_i32 = arith.constant 0 : i32
    %c0_i32_0 = arith.constant 0 : i32
    return %arg0, %c0_i32 : i32, i32
  }
  func.func @transform_1(%arg0: i32, %arg1: i32) -> (i32, i32) {
    %c0_i32 = arith.constant 0 : i32
    %c0_i32_0 = arith.constant 0 : i32
    return %c0_i32, %arg1 : i32, i32
  }
  func.func @transform_2(%arg0: i32, %arg1: i32) -> (i32, i32) {
    %c0_i32 = arith.constant 0 : i32
    return %arg0, %arg1 : i32, i32
  }
}

</mosaic_0001>

<llo_original>
// kernel: tpu_custom_call.1
$region0: #{tpu_custom_call.1}
  #allocation0 [shape = 'u32[]', space=smem, size = 0x4, offset = 0x4, fixed_abs, tag = 'smem constant byte address 0x4 - core index']
  #allocation1 [shape = 'u32[72,128]{1,0:T(1,128)}', space=vmem, size = 0x9000, scoped, tag = 'internal scratch']
  %s0 = inlined_call_operand.hbm [shape: f32[8,256], index: 0, kind: input, shape index: {}]
  %s1 = inlined_call_operand.hbm [shape: f32[256,256], index: 1, kind: input, shape index: {}]
  %s2 = inlined_call_operand.hbm [shape: f32[8,256], index: 2, kind: output, shape index: {}]
  %s3 = sld [smem:[#allocation0]]
  $region49: #{tpu_custom_call.1} parent=0
    _
  %s5 = ssub.s32 1, %s3
  %s6 = scalar_select 0, %s5, %s3
  $region1: #{tpu_custom_call.1} parent=0
    #allocation2 [shape = 'u8[8192]{0}', space=vmem, size = 0x2000, scoped, tag = 'input window, operand 0, single buffered']
    #allocation3 [shape = 's32[2]{0}', space=sflag, size = 0x8, scoped, tag = 'scoped memory for tpu_custom_call.1']
    #allocation4 [shape = 's32[2]{0}', space=sflag, size = 0x8, scoped, tag = 'scoped memory for tpu_custom_call.1']
    #allocation5 [shape = 'u8[262144]{0}', space=vmem, size = 0x40000, scoped, tag = 'input window, operand 1']
    #allocation6 [shape = 's32[2]{0}', space=sflag, size = 0x8, scoped, tag = 'scoped memory for tpu_custom_call.1']
    #allocation7 [shape = 'u8[8192]{0}', space=vmem, size = 0x2000, scoped, tag = 'output window, operand 0']
    %7 = vsyncpa [#allocation3], 0
    %8 = vsyncpa [#allocation6], 0
    %s9 = scalar_lea.sflag [#allocation6], 1
    %10 = vsyncpa %s9, 0
    %11 = vsyncpa [#allocation4], 0
    %s12 = scalar_lea.sflag [#allocation4], 1
    %13 = vsyncpa %s12, 0
    loop: start=0, step=1, limit=4
    $region2: #{tpu_custom_call.1} parent=1 // loop_pre_header
      _
    $region3: #{tpu_custom_call.1} parent=1 // loop_header
      %s15 = sphi 0, %s19
      %p16 = scmp.ge.s32.totalorder %s15, 4
      %s22 = sphi 0, %s34
      %s23 = sphi 0, %s30
      %s24 = sphi 0, %s22
      %s25 = sphi 0, %s23
      %s26 = sphi 0, %s24
      %s27 = sphi 0, %s25
      %s37 = sphi 0, %s39
      %s40 = sphi 0, %s37
      %s41 = sphi 0, %s40
      %s57 = sphi 0, %s41
      %s63 = sphi 0, %s65
      %s66 = sphi 0, %s63
      %s67 = sphi 0, %s66
      %s83 = sphi 0, %s67
      %s91 = sphi 0, %s93
      %s94 = sphi 0, %s91
      %s95 = sphi 0, %s94
      %s111 = sphi 0, %s95
    $region4: #{tpu_custom_call.1} parent=1 // loop_header_branch
      %18 = sbr.rel (%p16) target = $region8
    $region5: #{tpu_custom_call.1} parent=1 // loop_body
      %s20 = ssub.s32 %s15, 1
      %s21 = ssub.s32 %s15, 2
      %s28 = sadd.s32 1, %s23
      %p29 = scmp.ge.s32.totalorder %s28, 2
      %s30 = scalar_select %p29, 0, %s28
      %s31 = sadd.s32 1, %s22
      %s32 = scalar_select %p29, %s31, %s22
      %p33 = scmp.ge.s32.totalorder %s32, 1
      %s34 = scalar_select %p33, 0, %s32
      %s35 = ssub.s32 %s22, %s34
      %p36 = scmp.eq.s32.totalorder %s35, 0
      %s38 = sadd.s32 %s37, 1
      %s39 = scalar_select %p36, %s37, %s38
      %p42 = pneg %p36
      %p43 = scmp.eq.s32.totalorder %s15, 1
      %p44 = por %p42, %p43
      %p45 = scmp.ne.s32.totalorder %s37, %s40
      %p46 = scmp.eq.s32.totalorder %s15, 0
      %p47 = por %p45, %p46
      %p48 = scmp.ne.s32.totalorder %s37, %s40
      %p49 = scmp.eq.s32.totalorder %s20, 1
      %p50 = por %p48, %p49
      %p51 = scmp.ne.s32.totalorder %s40, %s41
      %p52 = scmp.eq.s32.totalorder %s20, 0
      %p53 = por %p51, %p52
      %p54 = scmp.ne.s32.totalorder %s40, %s41
      %p55 = scmp.eq.s32.totalorder %s21, 1
      %p56 = por %p54, %p55
      %p58 = scmp.ne.s32.totalorder %s41, %s57
      %p59 = scmp.eq.s32.totalorder %s21, 0
      %p60 = por %p58, %p59
      %s61 = ssub.s32 %s23, %s30
      %p62 = scmp.eq.s32.totalorder %s61, 0
      %s64 = sadd.s32 %s63, 1
      %s65 = scalar_select %p62, %s63, %s64
      %p68 = pneg %p62
      %p69 = scmp.eq.s32.totalorder %s15, 1
      %p70 = por %p68, %p69
      %p71 = scmp.ne.s32.totalorder %s63, %s66
      %p72 = scmp.eq.s32.totalorder %s15, 0
      %p73 = por %p71, %p72
      %p74 = scmp.ne.s32.totalorder %s63, %s66
      %p75 = scmp.eq.s32.totalorder %s20, 1
      %p76 = por %p74, %p75
      %p77 = scmp.ne.s32.totalorder %s66, %s67
      %p78 = scmp.eq.s32.totalorder %s20, 0
      %p79 = por %p77, %p78
      %p80 = scmp.ne.s32.totalorder %s66, %s67
      %p81 = scmp.eq.s32.totalorder %s21, 1
      %p82 = por %p80, %p81
      %p84 = scmp.ne.s32.totalorder %s67, %s83
      %p85 = scmp.eq.s32.totalorder %s21, 0
      %p86 = por %p84, %p85
      %s87 = ssub.s32 %s22, %s34
      %s88 = ssub.s32 %s23, %s30
      %s89 = sor.u32 %s87, %s88
      %p90 = scmp.eq.s32.totalorder %s89, 0
      %s92 = sadd.s32 %s91, 1
      %s93 = scalar_select %p90, %s91, %s92
      %p96 = pneg %p90
      %p97 = scmp.eq.s32.totalorder %s15, 1
      %p98 = por %p96, %p97
      %p99 = scmp.ne.s32.totalorder %s91, %s94
      %p100 = scmp.eq.s32.totalorder %s15, 0
      %p101 = por %p99, %p100
      %p102 = scmp.ne.s32.totalorder %s91, %s94
      %p103 = scmp.eq.s32.totalorder %s20, 1
      %p104 = por %p102, %p103
      %p105 = scmp.ne.s32.totalorder %s94, %s95
      %p106 = scmp.eq.s32.totalorder %s20, 0
      %p107 = por %p105, %p106
      %p108 = scmp.ne.s32.totalorder %s94, %s95
      %p109 = scmp.eq.s32.totalorder %s21, 1
      %p110 = por %p108, %p109
      %p112 = scmp.ne.s32.totalorder %s95, %s111
      %p113 = scmp.eq.s32.totalorder %s21, 0
      %p114 = por %p112, %p113
      %p115 = scmp.le.s32.totalorder 1, %s15
      %p116 = scmp.lt.s32.totalorder %s15, 3
      %p117 = pnand %p115, %p116
      %p118 = pneg %p117
      // Predicated region
      $region9: #{tpu_custom_call.1} parent=5 // pred_check
        _
      $region10: #{tpu_custom_call.1} parent=5 // pred_check_branch
        %120 = sbr.rel (%p117) target = $region12
      $region11: #{tpu_custom_call.1} parent=5 // pred_region
        %s121 = ssub.s32 %s15, 1
        // Predicated region
        $region13: #{tpu_custom_call.1} parent=11 // pred_check
          %p122 = pneg %p53
        $region14: #{tpu_custom_call.1} parent=11 // pred_check_branch
          %124 = sbr.rel (%p122) target = $region16
        $region15: #{tpu_custom_call.1} parent=11 // pred_region
          %126 = vsyncadd [#allocation3], 0
          %s127 = smul.addr %s24, 2
          %s128 = smul.addr %s127, 8
          %s129 = scalar_lea.hbm %s0, %s128
          %s131 = sshll.u32 %s129, 4
          %s132 = int_to_ptr.hbm [resolvable:$true] %s131
          %s133 = sshll.u32 [#allocation2], 4
          %s134 = int_to_ptr.vmem [resolvable:$true] %s133
          %136 = dma.hbm_to_vmem [thread:$0]  %s132, 256, %s134, [#allocation3]
        $region16: #{tpu_custom_call.1} parent=11 // pred_fallthru
          _
      $region12: #{tpu_custom_call.1} parent=5 // pred_fallthru
        _
      %p137 = scmp.lt.s32.totalorder %s15, 2
      // Predicated region
      $region17: #{tpu_custom_call.1} parent=5 // pred_check
        %p138 = pneg %p137
      $region18: #{tpu_custom_call.1} parent=5 // pred_check_branch
        %140 = sbr.rel (%p138) target = $region20
      $region19: #{tpu_custom_call.1} parent=5 // pred_region
        // Predicated region
        $region21: #{tpu_custom_call.1} parent=19 // pred_check
          %p141 = pneg %p73
        $region22: #{tpu_custom_call.1} parent=19 // pred_check_branch
          %143 = sbr.rel (%p141) target = $region24
        $region23: #{tpu_custom_call.1} parent=19 // pred_region
          %s144 = sand.u32 %s63, 1
          %s145 = scalar_lea.sflag [#allocation6], %s144
          %s146 = sand.u32 %s63, 1
          %s147 = smul.addr %s146, 256
          %s148 = scalar_lea.vmem [#allocation5], %s147
          %150 = vsyncadd %s145, 0
          %s151 = smul.addr %s23, 8
          %s152 = scalar_lea.hbm %s1, %s151
          %s153 = sshll.u32 %s152, 4
          %s154 = int_to_ptr.hbm [resolvable:$true] %s153
          %s155 = sshll.u32 %s148, 4
          %s156 = int_to_ptr.vmem [resolvable:$true] %s155
          %161 = dma.hbm_to_vmem [thread:$0]  %s154, 4096, %s156, %s145, 256, 128, 8
        $region24: #{tpu_custom_call.1} parent=19 // pred_fallthru
          _
      $region20: #{tpu_custom_call.1} parent=5 // pred_fallthru
        _
      %p162 = scmp.le.s32.totalorder 1, %s15
      %p163 = scmp.lt.s32.totalorder %s15, 3
      %p164 = pnand %p162, %p163
      %p165 = pneg %p164
      // Predicated region
      $region25: #{tpu_custom_call.1} parent=5 // pred_check
        _
      $region26: #{tpu_custom_call.1} parent=5 // pred_check_branch
        %167 = sbr.rel (%p164) target = $region28
      $region27: #{tpu_custom_call.1} parent=5 // pred_region
        %s168 = ssub.s32 %s15, 1
        // Predicated region
        $region29: #{tpu_custom_call.1} parent=27 // pred_check
          %p169 = pneg %p53
        $region30: #{tpu_custom_call.1} parent=27 // pred_check_branch
          %171 = sbr.rel (%p169) target = $region32
        $region31: #{tpu_custom_call.1} parent=27 // pred_region
          %173 = dma.done [#allocation3], 256
        $region32: #{tpu_custom_call.1} parent=27 // pred_fallthru
          _
        %s174 = sand.u32 %s66, 1
        %s175 = scalar_lea.sflag [#allocation6], %s174
        %s176 = sand.u32 %s66, 1
        %s177 = smul.addr %s176, 256
        %s178 = scalar_lea.vmem [#allocation5], %s177
        // Predicated region
        $region33: #{tpu_custom_call.1} parent=27 // pred_check
          %p179 = pneg %p79
        $region34: #{tpu_custom_call.1} parent=27 // pred_check_branch
          %181 = sbr.rel (%p179) target = $region36
        $region35: #{tpu_custom_call.1} parent=27 // pred_region
          %183 = dma.done %s175, 4096
        $region36: #{tpu_custom_call.1} parent=27 // pred_fallthru
          _
        %p184 = pneg %p53
        %p185 = pneg %p50
        %s186 = sand.u32 %s66, 1
        %s187 = scalar_lea.sflag [#allocation6], %s186
        %s188 = sand.u32 %s66, 1
        %s189 = smul.addr %s188, 256
        %s190 = scalar_lea.vmem [#allocation5], %s189
        %p191 = pneg %p79
        %p192 = pneg %p76
        %p193 = pneg %p107
        %p194 = pneg %p104
        %s195 = sand.u32 %s94, 1
        %s196 = scalar_lea.sflag [#allocation4], %s195
        %s197 = sand.u32 %s94, 1
        %s198 = smul.addr %s197, 8
        %s199 = scalar_lea.vmem [#allocation7], %s198
        %v200 = vld [vmem:[#allocation2] sm:$0xff]
        %v201 = vld [vmem:[#allocation2 + $0x8] sm:$0xff]
        %v202 = vld [vmem:[%s178] sm:$0xff]
        %v203 = vld [vmem:[%s178 + $0x8] sm:$0xff]
        %v204 = vld [vmem:[%s178 + $0x10] sm:$0xff]
        %v205 = vld [vmem:[%s178 + $0x18] sm:$0xff]
        %v206 = vld [vmem:[%s178 + $0x20] sm:$0xff]
        %v207 = vld [vmem:[%s178 + $0x28] sm:$0xff]
        %v208 = vld [vmem:[%s178 + $0x30] sm:$0xff]
        %v209 = vld [vmem:[%s178 + $0x38] sm:$0xff]
        %v210 = vld [vmem:[%s178 + $0x40] sm:$0xff]
        %v211 = vld [vmem:[%s178 + $0x48] sm:$0xff]
        %v212 = vld [vmem:[%s178 + $0x50] sm:$0xff]
        %v213 = vld [vmem:[%s178 + $0x58] sm:$0xff]
        %v214 = vld [vmem:[%s178 + $0x60] sm:$0xff]
        %v215 = vld [vmem:[%s178 + $0x68] sm:$0xff]
        %v216 = vld [vmem:[%s178 + $0x70] sm:$0xff]
        %v217 = vld [vmem:[%s178 + $0x78] sm:$0xff]
        %v218 = vld [vmem:[%s178 + $0x80] sm:$0xff]
        %v219 = vld [vmem:[%s178 + $0x88] sm:$0xff]
        %v220 = vld [vmem:[%s178 + $0x90] sm:$0xff]
        %v221 = vld [vmem:[%s178 + $0x98] sm:$0xff]
        %v222 = vld [vmem:[%s178 + $0xa0] sm:$0xff]
        %v223 = vld [vmem:[%s178 + $0xa8] sm:$0xff]
        %v224 = vld [vmem:[%s178 + $0xb0] sm:$0xff]
        %v225 = vld [vmem:[%s178 + $0xb8] sm:$0xff]
        %v226 = vld [vmem:[%s178 + $0xc0] sm:$0xff]
        %v227 = vld [vmem:[%s178 + $0xc8] sm:$0xff]
        %v228 = vld [vmem:[%s178 + $0xd0] sm:$0xff]
        %v229 = vld [vmem:[%s178 + $0xd8] sm:$0xff]
        %v230 = vld [vmem:[%s178 + $0xe0] sm:$0xff]
        %v231 = vld [vmem:[%s178 + $0xe8] sm:$0xff]
        %v232 = vld [vmem:[%s178 + $0xf0] sm:$0xff]
        %v233 = vld [vmem:[%s178 + $0xf8] sm:$0xff]
        %234 = vmatpush.msra.mxu0 %v217
        %235 = vmatpush.msra.mxu0 %v216
        %236 = vmatpush.msra.mxu0 %v215
        %237 = vmatpush.msra.mxu0 %v214
        %238 = vmatpush.msra.mxu0 %v213
        %239 = vmatpush.msra.mxu0 %v212
        %240 = vmatpush.msra.mxu0 %v211
        %241 = vmatpush.msra.mxu0 %v210
        %242 = vmatpush.msra.mxu0 %v209
        %243 = vmatpush.msra.mxu0 %v208
        %244 = vmatpush.msra.mxu0 %v207
        %245 = vmatpush.msra.mxu0 %v206
        %246 = vmatpush.msra.mxu0 %v205
        %247 = vmatpush.msra.mxu0 %v204
        %248 = vmatpush.msra.mxu0 %v203
        %249 = vmatpush.msra.mxu0 %v202
        %250 = vmatmul.f32.gmra.mxu0 %v200
        %v251 = vpop.f32.mrf.mxu0
        %v252 = vadd.f32 0.0, %v251
        %253 = vdwg.mxu0
        %254 = vmatpush.msra.mxu0 %v233
        %255 = vmatpush.msra.mxu0 %v232
        %256 = vmatpush.msra.mxu0 %v231
        %257 = vmatpush.msra.mxu0 %v230
        %258 = vmatpush.msra.mxu0 %v229
        %259 = vmatpush.msra.mxu0 %v228
        %260 = vmatpush.msra.mxu0 %v227
        %261 = vmatpush.msra.mxu0 %v226
        %262 = vmatpush.msra.mxu0 %v225
        %263 = vmatpush.msra.mxu0 %v224
        %264 = vmatpush.msra.mxu0 %v223
        %265 = vmatpush.msra.mxu0 %v222
        %266 = vmatpush.msra.mxu0 %v221
        %267 = vmatpush.msra.mxu0 %v220
        %268 = vmatpush.msra.mxu0 %v219
        %269 = vmatpush.msra.mxu0 %v218
        %270 = vmatmul.f32.gmra.mxu0 %v201
        %v271 = vpop.f32.mrf.mxu0
        %v272 = vadd.f32 %v252, %v271
        %273 = vdwg.mxu0
        %274 = vst [vmem:[%s199] sm:$0xff] %v272
        %s275 = sand.u32 %s94, 1
        %s276 = scalar_lea.sflag [#allocation4], %s275
        %s277 = sand.u32 %s94, 1
        %s278 = smul.addr %s277, 8
        %s279 = scalar_lea.vmem [#allocation7], %s278
        // Predicated region
        $region37: #{tpu_custom_call.1} parent=27 // pred_check
          %p280 = pneg %p104
        $region38: #{tpu_custom_call.1} parent=27 // pred_check_branch
          %282 = sbr.rel (%p280) target = $region40
        $region39: #{tpu_custom_call.1} parent=27 // pred_region
          %284 = vsyncadd %s276, 0
          %s285 = smul.addr %s24, 2
          %s286 = sadd.s32 %s25, %s285
          %s287 = smul.addr %s286, 8
          %s288 = scalar_lea.hbm %s2, %s287
          %s290 = sshll.u32 %s279, 4
          %s291 = int_to_ptr.vmem [resolvable:$true] %s290
          %s292 = sshll.u32 %s288, 4
          %s293 = int_to_ptr.hbm [resolvable:$true] %s292
          %295 = dma.vmem_to_hbm [thread:$0]  %s291, 128, %s293, %s276
        $region40: #{tpu_custom_call.1} parent=27 // pred_fallthru
          _
      $region28: #{tpu_custom_call.1} parent=5 // pred_fallthru
        _
      %p296 = scmp.le.s32.totalorder 2, %s15
      // Predicated region
      $region41: #{tpu_custom_call.1} parent=5 // pred_check
        %p297 = pneg %p296
      $region42: #{tpu_custom_call.1} parent=5 // pred_check_branch
        %299 = sbr.rel (%p297) target = $region44
      $region43: #{tpu_custom_call.1} parent=5 // pred_region
        %s300 = ssub.s32 %s15, 2
        // Predicated region
        $region45: #{tpu_custom_call.1} parent=43 // pred_check
          %p301 = pneg %p110
        $region46: #{tpu_custom_call.1} parent=43 // pred_check_branch
          %303 = sbr.rel (%p301) target = $region48
        $region47: #{tpu_custom_call.1} parent=43 // pred_region
          %s304 = sand.u32 %s95, 1
          %s305 = scalar_lea.sflag [#allocation4], %s304
          %s306 = sand.u32 %s95, 1
          %s307 = smul.addr %s306, 8
          %s308 = scalar_lea.vmem [#allocation7], %s307
          %310 = dma.done %s305, 128
        $region48: #{tpu_custom_call.1} parent=43 // pred_fallthru
          _
      $region44: #{tpu_custom_call.1} parent=5 // pred_fallthru
        _
    $region6: #{tpu_custom_call.1} parent=1 // loop_footer
      %s19 = sadd.s32 1, %s15
    $region7: #{tpu_custom_call.1} parent=1 // loop_footer_branch
      %14 = sbr.rel target = $region3
    $region8: #{tpu_custom_call.1} parent=1 // loop_exit
      _
    %311 = vsyncpa [#allocation3], 1
    %s312 = scalar_lea.sflag [#allocation3], 1
    %313 = vsyncpa %s312, 1
    %314 = vsyncpa [#allocation6], 1
    %s315 = scalar_lea.sflag [#allocation6], 1
    %316 = vsyncpa %s315, 1
    %317 = vsyncpa [#allocation4], 1
    %s318 = scalar_lea.sflag [#allocation4], 1
    %319 = vsyncpa %s318, 1

</llo_original>
